<compile_context>
chip_gen: v5e
topology: v5e:2x2
jax: 0.10.0
libtpu: 0.0.40
codegen_flags: <defaults>
</compile_context>

<pallas_src>
import math

import jax
import jax.numpy as jnp
from jax.experimental import pallas as pl
from jax.experimental.pallas import tpu as pltpu


def _to_rgb_kernel(x_ref, w_ref, b_ref, o_ref):
    # x_ref: (1, Cin, T)     input tile for (batch b, spatial tile t), streamed dtype
    # w_ref: (1, Cout, Cin)  per-batch modulated 1x1 weight (same dtype as x)
    # b_ref: (Cout, 1)       ToRGB bias (f32)
    # o_ref: (1, Cout, T)    lane-dense output tile (already NCHW-flattened)
    acc = jnp.dot(w_ref[0], x_ref[0], preferred_element_type=jnp.float32)  # (Cout, T) f32
    o_ref[...] = (acc + b_ref[...])[None].astype(o_ref.dtype)


def _vmem_budgets():
    """(max_tile_bytes, vmem_limit_bytes) tuned per TPU generation."""
    kind = ""
    try:
        kind = jax.devices()[0].device_kind.lower()
    except Exception:
        pass
    if "v5" in kind or "v6" in kind:
        # 128 MiB physical VMEM: let T reach 1-2k lanes for large Cin.
        return 28 * 1024 * 1024, 64 * 1024 * 1024
    if "v7" in kind or "7x" in kind:
        # 64 MiB physical per TC: biggest tile with double-buffering headroom.
        return 20 * 1024 * 1024, 48 * 1024 * 1024
    return 16 * 1024 * 1024, 32 * 1024 * 1024  # conservative fallback


def _pick_hw_tile(hw, cin, cout, itemsize, batch, max_tile_bytes):
    """Lane-dense spatial tile T (a multiple of 128, or the full HW when tiny).

    Double-buffered in+out working set per grid step ~= 2*(cin+cout)*T*itemsize;
    keep it under max_tile_bytes.  HW need NOT be divisible by T: the grid uses
    cdiv and Pallas masks the partial last block.
    """
    per_lane = 2 * (cin + cout) * itemsize
    t_budget = max(128, (max_tile_bytes // per_lane) // 128 * 128)

    if hw <= 128:
        return hw  # tiny image: single full block (block == full dim is legal)

    if hw % 128 == 0:
        t = min(t_budget, hw)
    else:
        # Non-128-divisible HW: take the full dim only if it fits the byte
        # budget, otherwise a 128-multiple tile with a masked partial last block.
        t = hw if hw <= t_budget else t_budget

    # v7x megacore: with a single batch, guarantee >= 2 spatial tiles so both
    # TensorCores get grid steps (near-free on v5e/v6e).
    if batch == 1 and t >= hw and hw >= 256:
        half = pl.cdiv(pl.cdiv(hw, 2), 128) * 128
        t = min(t, half)

    return t


def to_rgb(x_nchw, style, conv_weight, mod_weight, mod_bias, rgb_bias, skip=None):
    """Forward matching torch ToRGB (ModulatedConv2d(Cin, 3, 1, demodulate=False) + bias).

    x_nchw:      (B, Cin, H, W)           f32 or bf16
    style:       (B, S)
    conv_weight: (1, Cout, Cin, 1, 1)     (ToRGB: Cout = 3)
    mod_weight:  (Cin, S)                 EqualLinear weight
    mod_bias:    (Cin,)                   EqualLinear bias (bias_init = 1)
    rgb_bias:    (1, Cout, 1, 1)
    """
    if skip is not None:
        # TODO(synk): skip path (upfirdn2d upsample with blur [1,3,3,1] + residual add)
        #             not implemented; fuse it into this kernel when added.
        raise NotImplementedError("ToRGB skip/upsample path not implemented")

    B, Cin, H, W = x_nchw.shape
    _, Cout, Cin_w, KH, KW = conv_weight.shape
    assert Cin_w == Cin and KH == 1 and KW == 1, "ToRGB uses a 1x1 modulated conv"
    S = style.shape[1]

    conv_scale = 1.0 / math.sqrt(Cin)   # fan_in = Cin * 1 * 1
    mod_scale = 1.0 / math.sqrt(S)      # EqualLinear scale (lr_mul = 1)

    # --- tiny glue done once in plain JAX (f32): s = EqualLinear(style), then fold
    # conv_scale and the modulation into a per-batch (Cout, Cin) weight.
    s = style.astype(jnp.float32) @ (mod_weight.astype(jnp.float32) * mod_scale).T
    s = (s + mod_bias.astype(jnp.float32)) * conv_scale                       # (B, Cin)
    w2d = conv_weight.reshape(Cout, Cin).astype(jnp.float32)                  # (Cout, Cin)
    w_mod = (s[:, None, :] * w2d[None]).astype(x_nchw.dtype)                  # (B, Cout, Cin)

    bias2d = rgb_bias.reshape(Cout, 1).astype(jnp.float32)

    HW = H * W
    x_flat = x_nchw.reshape(B, Cin, HW)   # free reshape: no pad, no transpose

    max_tile_bytes, vmem_limit = _vmem_budgets()
    T = _pick_hw_tile(HW, Cin, Cout, x_flat.dtype.itemsize, B, max_tile_bytes)
    grid = (B, pl.cdiv(HW, T))

    out_flat = pl.pallas_call(
        _to_rgb_kernel,
        out_shape=jax.ShapeDtypeStruct((B, Cout, HW), x_nchw.dtype),
        grid_spec=pltpu.PrefetchScalarGridSpec(
            num_scalar_prefetch=0,
            grid=grid,
            in_specs=[
                pl.BlockSpec((1, Cin, T), lambda b, t: (b, 0, t)),     # x tile (streamed)
                pl.BlockSpec((1, Cout, Cin), lambda b, t: (b, 0, 0)),  # per-batch w_mod
                pl.BlockSpec((Cout, 1), lambda b, t: (0, 0)),          # rgb bias
            ],
            out_specs=pl.BlockSpec((1, Cout, T), lambda b, t: (b, 0, t)),
        ),
        compiler_params=pltpu.CompilerParams(
            dimension_semantics=("parallel", "parallel"),
            vmem_limit_bytes=vmem_limit,
        ),
    )(x_flat, w_mod, bias2d)

    return out_flat.reshape(B, Cout, H, W)


def reference_to_rgb(x, style, conv_weight, mod_weight, mod_bias, rgb_bias):
    """Pure-JAX reference replicating the torch ToRGB forward (skip=None)."""
    B, Cin, H, W = x.shape
    Cout = conv_weight.shape[1]
    S = style.shape[1]
    conv_scale = 1.0 / math.sqrt(Cin)
    mod_scale = 1.0 / math.sqrt(S)

    s = style @ (mod_weight * mod_scale).T + mod_bias             # EqualLinear, (B, Cin)
    w = conv_scale * conv_weight[0, :, :, 0, 0]                   # (Cout, Cin)
    out = jnp.einsum("bc,oc,bchw->bohw", s, w, x,
                     precision=jax.lax.Precision.HIGHEST)
    return out + rgb_bias.reshape(1, Cout, 1, 1)


if __name__ == "__main__":
    # small, module-consistent shapes: ToRGB(in_channel=4, style_dim=16) on 16x16 maps
    B, Cin, Cout, S, H, W = 2, 4, 3, 16, 16, 16

    key = jax.random.PRNGKey(0)
    k1, k2, k3, k4, k5 = jax.random.split(key, 5)

    # module parameters (deterministic synthetic init, shapes match ToRGB.__init__)
    conv_weight = jax.random.normal(k1, (1, Cout, Cin, 1, 1), jnp.float32)
    mod_weight = jax.random.normal(k2, (Cin, S), jnp.float32)    # EqualLinear weight
    mod_bias = jnp.ones((Cin,), jnp.float32)                     # bias_init = 1
    rgb_bias = 0.1 * jax.random.normal(k5, (1, Cout, 1, 1), jnp.float32)

    # inputs
    x = jax.random.normal(k3, (B, Cin, H, W), jnp.float32)
    style = jax.random.normal(k4, (B, S), jnp.float32)

    out = to_rgb(x, style, conv_weight, mod_weight, mod_bias, rgb_bias)
    out = jax.block_until_ready(out)
    assert out.shape == (B, Cout, H, W), out.shape

    ref = reference_to_rgb(x, style, conv_weight, mod_weight, mod_bias, rgb_bias)
    if not bool(jnp.allclose(out, ref, atol=2e-2, rtol=2e-2)):
        max_err = float(jnp.max(jnp.abs(out - ref)))
        raise AssertionError(f"mismatch vs reference, max abs err = {max_err}")

    print("KERNEL_OK")
</pallas_src>

<mosaic_0001>
module attributes {stable_mosaic.version = 11 : i64} {
  func.func @_to_rgb_kernel(%arg0: i32, %arg1: i32, %arg2: memref<1x4x256xf32, #tpu.memory_space<vmem>>, %arg3: memref<1x3x4xf32, #tpu.memory_space<vmem>>, %arg4: memref<3x1xf32, #tpu.memory_space<vmem>>, %arg5: memref<1x3x256xf32, #tpu.memory_space<vmem>>) attributes {dimension_semantics = [#tpu.dimension_semantics<parallel>, #tpu.dimension_semantics<parallel>], iteration_bounds = array<i64: 2, 1>, scalar_prefetch = 0 : i64, scratch_operands = 0 : i64, tpu.core_type = #tpu.core_type<tc>, window_params = [{transform_indices = @transform_0, window_bounds = array<i64: 1, 4, 256>}, {transform_indices = @transform_1, window_bounds = array<i64: 1, 3, 4>}, {pipeline_mode = #tpu.pipeline_mode<synchronous>, transform_indices = @transform_2, window_bounds = array<i64: 3, 1>}, {transform_indices = @transform_3, window_bounds = array<i64: 1, 3, 256>}]} {
    %c0 = arith.constant 0 : index
    %c0_0 = arith.constant 0 : index
    %c0_1 = arith.constant 0 : index
    %0 = vector.load %arg3[%c0, %c0_0, %c0_1] : memref<1x3x4xf32, #tpu.memory_space<vmem>>, vector<1x3x4xf32>
    %1 = vector.shape_cast %0 : vector<1x3x4xf32> to vector<3x4xf32>
    %c0_2 = arith.constant 0 : index
    %c0_3 = arith.constant 0 : index
    %c0_4 = arith.constant 0 : index
    %2 = vector.load %arg2[%c0_2, %c0_3, %c0_4] : memref<1x4x256xf32, #tpu.memory_space<vmem>>, vector<1x4x256xf32>
    %3 = vector.shape_cast %2 : vector<1x4x256xf32> to vector<4x256xf32>
    %cst = arith.constant dense<0.000000e+00> : vector<3x256xf32>
    %4 = tpu.matmul %1, %3, %cst {dimension_numbers = #tpu.dot_dimension_numbers<[1], [0], [0], [1], [0, 0, 1, 1], [], []>} : vector<3x4xf32>, vector<4x256xf32>, vector<3x256xf32> -> vector<3x256xf32>
    %c0_5 = arith.constant 0 : index
    %c0_6 = arith.constant 0 : index
    %5 = vector.load %arg4[%c0_5, %c0_6] : memref<3x1xf32, #tpu.memory_space<vmem>>, vector<3x1xf32>
    %6 = vector.broadcast %5 : vector<3x1xf32> to vector<3x256xf32>
    %7 = arith.addf %4, %6 : vector<3x256xf32>
    %8 = vector.shape_cast %7 : vector<3x256xf32> to vector<1x3x256xf32>
    %c0_7 = arith.constant 0 : index
    %c0_8 = arith.constant 0 : index
    %c0_9 = arith.constant 0 : index
    %9 = vector.load %arg5[%c0_7, %c0_8, %c0_9] : memref<1x3x256xf32, #tpu.memory_space<vmem>>, vector<1x3x256xf32>
    tpu.vector_store %arg5[%c0_7, %c0_8, %c0_9], %8 {strides = array<i32>} : memref<1x3x256xf32, #tpu.memory_space<vmem>>, vector<1x3x256xf32>,
    return
  }
  func.func @transform_0(%arg0: i32, %arg1: i32) -> (i32, i32, i32) {
    %c0_i32 = arith.constant 0 : i32
    %c0_i32_0 = arith.constant 0 : i32
    return %arg0, %c0_i32, %arg1 : i32, i32, i32
  }
  func.func @transform_1(%arg0: i32, %arg1: i32) -> (i32, i32, i32) {
    %c0_i32 = arith.constant 0 : i32
    %c0_i32_0 = arith.constant 0 : i32
    %c0_i32_1 = arith.constant 0 : i32
    return %arg0, %c0_i32, %c0_i32_0 : i32, i32, i32
  }
  func.func @transform_2(%arg0: i32, %arg1: i32) -> (i32, i32) {
    %c0_i32 = arith.constant 0 : i32
    %c0_i32_0 = arith.constant 0 : i32
    %c0_i32_1 = arith.constant 0 : i32
    return %c0_i32, %c0_i32_0 : i32, i32
  }
  func.func @transform_3(%arg0: i32, %arg1: i32) -> (i32, i32, i32) {
    %c0_i32 = arith.constant 0 : i32
    %c0_i32_0 = arith.constant 0 : i32
    return %arg0, %c0_i32, %arg1 : i32, i32, i32
  }
}

</mosaic_0001>

<llo_original>
// kernel: tpu_custom_call.1
$region0: #{tpu_custom_call.1}
  #allocation0 [shape = 'u32[]', space=smem, size = 0x4, offset = 0x4, fixed_abs, tag = 'smem constant byte address 0x4 - core index']
  #allocation1 [shape = 'u32[72,128]{1,0:T(1,128)}', space=vmem, size = 0x9000, scoped, tag = 'internal scratch']
  %s0 = inlined_call_operand.vmem [shape: f32[2,4,256], index: 0, kind: input, shape index: {}]
  %s1 = inlined_call_operand.vmem [shape: f32[2,3,4], index: 1, kind: input, shape index: {}]
  %s2 = inlined_call_operand.vmem [shape: f32[3,1], index: 2, kind: input, shape index: {}]
  %s3 = inlined_call_operand.vmem [shape: f32[2,3,256], index: 3, kind: output, shape index: {}]
  %s4 = sld [smem:[#allocation0]]
  $region45: #{tpu_custom_call.1} parent=0
    _
  %s6 = ssub.s32 1, %s4
  %s7 = scalar_select 0, %s6, %s4
  loop: start=0, step=1, limit=4
  $region2: #{tpu_custom_call.1} parent=0 // loop_pre_header
    _
  $region3: #{tpu_custom_call.1} parent=0 // loop_header
    %s9 = sphi 0, %s13
    %p10 = scmp.ge.s32.totalorder %s9, 4
    %s16 = sphi 0, %s28
    %s17 = sphi 0, %s24
    %s18 = sphi 0, %s16
    %s19 = sphi 0, %s17
    %s20 = sphi 0, %s18
    %s21 = sphi 0, %s19
    %s33 = sphi 0, %s35
    %s36 = sphi 0, %s33
    %s37 = sphi 0, %s36
    %s53 = sphi 0, %s37
    %s59 = sphi 0, %s61
    %s62 = sphi 0, %s59
    %s63 = sphi 0, %s62
    %s79 = sphi 0, %s63
    %s83 = sphi 0, %s83
    %s85 = sphi 0, %s83
    %s86 = sphi 0, %s85
    %s100 = sphi 0, %s86
    %s108 = sphi 0, %s110
    %s111 = sphi 0, %s108
    %s112 = sphi 0, %s111
    %s128 = sphi 0, %s112
  $region4: #{tpu_custom_call.1} parent=0 // loop_header_branch
    %12 = sbr.rel (%p10) target = $region8
  $region5: #{tpu_custom_call.1} parent=0 // loop_body
    %s14 = ssub.s32 %s9, 1
    %s15 = ssub.s32 %s9, 2
    %s22 = sadd.s32 1, %s17
    %p23 = scmp.ge.s32.totalorder %s22, 1
    %s24 = scalar_select %p23, 0, %s22
    %s25 = sadd.s32 1, %s16
    %s26 = scalar_select %p23, %s25, %s16
    %p27 = scmp.ge.s32.totalorder %s26, 2
    %s28 = scalar_select %p27, 0, %s26
    %s29 = ssub.s32 %s16, %s28
    %s30 = ssub.s32 %s17, %s24
    %s31 = sor.u32 %s29, %s30
    %p32 = scmp.eq.s32.totalorder %s31, 0
    %s34 = sadd.s32 %s33, 1
    %s35 = scalar_select %p32, %s33, %s34
    %p38 = pneg %p32
    %p39 = scmp.eq.s32.totalorder %s9, 1
    %p40 = por %p38, %p39
    %p41 = scmp.ne.s32.totalorder %s33, %s36
    %p42 = scmp.eq.s32.totalorder %s9, 0
    %p43 = por %p41, %p42
    %p44 = scmp.ne.s32.totalorder %s33, %s36
    %p45 = scmp.eq.s32.totalorder %s14, 1
    %p46 = por %p44, %p45
    %p47 = scmp.ne.s32.totalorder %s36, %s37
    %p48 = scmp.eq.s32.totalorder %s14, 0
    %p49 = por %p47, %p48
    %p50 = scmp.ne.s32.totalorder %s36, %s37
    %p51 = scmp.eq.s32.totalorder %s15, 1
    %p52 = por %p50, %p51
    %p54 = scmp.ne.s32.totalorder %s37, %s53
    %p55 = scmp.eq.s32.totalorder %s15, 0
    %p56 = por %p54, %p55
    %s57 = ssub.s32 %s16, %s28
    %p58 = scmp.eq.s32.totalorder %s57, 0
    %s60 = sadd.s32 %s59, 1
    %s61 = scalar_select %p58, %s59, %s60
    %p64 = pneg %p58
    %p65 = scmp.eq.s32.totalorder %s9, 1
    %p66 = por %p64, %p65
    %p67 = scmp.ne.s32.totalorder %s59, %s62
    %p68 = scmp.eq.s32.totalorder %s9, 0
    %p69 = por %p67, %p68
    %p70 = scmp.ne.s32.totalorder %s59, %s62
    %p71 = scmp.eq.s32.totalorder %s14, 1
    %p72 = por %p70, %p71
    %p73 = scmp.ne.s32.totalorder %s62, %s63
    %p74 = scmp.eq.s32.totalorder %s14, 0
    %p75 = por %p73, %p74
    %p76 = scmp.ne.s32.totalorder %s62, %s63
    %p77 = scmp.eq.s32.totalorder %s15, 1
    %p78 = por %p76, %p77
    %p80 = scmp.ne.s32.totalorder %s63, %s79
    %p81 = scmp.eq.s32.totalorder %s15, 0
    %p82 = por %p80, %p81
    %s84 = sadd.s32 %s83, 1
    %p87 = scmp.eq.s32.totalorder %s9, 1
    %p88 = scmp.ne.s32.totalorder %s83, %s85
    %p89 = scmp.eq.s32.totalorder %s9, 0
    %p90 = por %p88, %p89
    %p91 = scmp.ne.s32.totalorder %s83, %s85
    %p92 = scmp.eq.s32.totalorder %s14, 1
    %p93 = por %p91, %p92
    %p94 = scmp.ne.s32.totalorder %s85, %s86
    %p95 = scmp.eq.s32.totalorder %s14, 0
    %p96 = por %p94, %p95
    %p97 = scmp.ne.s32.totalorder %s85, %s86
    %p98 = scmp.eq.s32.totalorder %s15, 1
    %p99 = por %p97, %p98
    %p101 = scmp.ne.s32.totalorder %s86, %s100
    %p102 = scmp.eq.s32.totalorder %s15, 0
    %p103 = por %p101, %p102
    %s104 = ssub.s32 %s16, %s28
    %s105 = ssub.s32 %s17, %s24
    %s106 = sor.u32 %s104, %s105
    %p107 = scmp.eq.s32.totalorder %s106, 0
    %s109 = sadd.s32 %s108, 1
    %s110 = scalar_select %p107, %s108, %s109
    %p113 = pneg %p107
    %p114 = scmp.eq.s32.totalorder %s9, 1
    %p115 = por %p113, %p114
    %p116 = scmp.ne.s32.totalorder %s108, %s111
    %p117 = scmp.eq.s32.totalorder %s9, 0
    %p118 = por %p116, %p117
    %p119 = scmp.ne.s32.totalorder %s108, %s111
    %p120 = scmp.eq.s32.totalorder %s14, 1
    %p121 = por %p119, %p120
    %p122 = scmp.ne.s32.totalorder %s111, %s112
    %p123 = scmp.eq.s32.totalorder %s14, 0
    %p124 = por %p122, %p123
    %p125 = scmp.ne.s32.totalorder %s111, %s112
    %p126 = scmp.eq.s32.totalorder %s15, 1
    %p127 = por %p125, %p126
    %p129 = scmp.ne.s32.totalorder %s112, %s128
    %p130 = scmp.eq.s32.totalorder %s15, 0
    %p131 = por %p129, %p130
    %p132 = scmp.le.s32.totalorder 1, %s9
    %p133 = scmp.lt.s32.totalorder %s9, 3
    %p134 = pnand %p132, %p133
    %p135 = pneg %p134
    // Predicated region
    $region9: #{tpu_custom_call.1} parent=5 // pred_check
      _
    $region10: #{tpu_custom_call.1} parent=5 // pred_check_branch
      %137 = sbr.rel (%p134) target = $region12
    $region11: #{tpu_custom_call.1} parent=5 // pred_region
      %s138 = ssub.s32 %s9, 1
      // Predicated region
      $region13: #{tpu_custom_call.1} parent=11 // pred_check
        %p139 = pneg %p96
      $region14: #{tpu_custom_call.1} parent=11 // pred_check_branch
        %141 = sbr.rel (%p139) target = $region16
      $region15: #{tpu_custom_call.1} parent=11 // pred_region
        _
      $region16: #{tpu_custom_call.1} parent=11 // pred_fallthru
        _
    $region12: #{tpu_custom_call.1} parent=5 // pred_fallthru
      _
    %p142 = scmp.lt.s32.totalorder %s9, 2
    // Predicated region
    $region17: #{tpu_custom_call.1} parent=5 // pred_check
      %p143 = pneg %p142
    $region18: #{tpu_custom_call.1} parent=5 // pred_check_branch
      %145 = sbr.rel (%p143) target = $region20
    $region19: #{tpu_custom_call.1} parent=5 // pred_region
      // Predicated region
      $region21: #{tpu_custom_call.1} parent=19 // pred_check
        %p146 = pneg %p43
      $region22: #{tpu_custom_call.1} parent=19 // pred_check_branch
        %148 = sbr.rel (%p146) target = $region24
      $region23: #{tpu_custom_call.1} parent=19 // pred_region
        %s149 = smul.u32 2, %s17
        %p150 = scmp.lt.s32.totalorder %s16, 1
        %s151 = scalar_select %p150, %s16, 1
        %p152 = scmp.lt.s32.totalorder %s149, 1
        %s153 = scalar_select %p152, %s149, 1
        %s154 = smul.addr %s151, 2
        %s155 = sadd.s32 %s153, %s154
        %s156 = smul.addr %s155, 4
        %s157 = scalar_lea.vmem %s0, %s156
        %s158 = smul.u32 2, %s17
      $region24: #{tpu_custom_call.1} parent=19 // pred_fallthru
        _
      // Predicated region
      $region25: #{tpu_custom_call.1} parent=19 // pred_check
        %p159 = pneg %p69
      $region26: #{tpu_custom_call.1} parent=19 // pred_check_branch
        %161 = sbr.rel (%p159) target = $region28
      $region27: #{tpu_custom_call.1} parent=19 // pred_region
        %p162 = scmp.lt.s32.totalorder %s16, 1
        %s163 = scalar_select %p162, %s16, 1
        %s164 = smul.addr %s163, 4
        %s165 = scalar_lea.vmem %s1, %s164
      $region28: #{tpu_custom_call.1} parent=19 // pred_fallthru
        _
    $region20: #{tpu_custom_call.1} parent=5 // pred_fallthru
      _
    %p166 = scmp.le.s32.totalorder 1, %s9
    %p167 = scmp.lt.s32.totalorder %s9, 3
    %p168 = pnand %p166, %p167
    %p169 = pneg %p168
    // Predicated region
    $region29: #{tpu_custom_call.1} parent=5 // pred_check
      _
    $region30: #{tpu_custom_call.1} parent=5 // pred_check_branch
      %171 = sbr.rel (%p168) target = $region32
    $region31: #{tpu_custom_call.1} parent=5 // pred_region
      %s172 = ssub.s32 %s9, 1
      %s173 = smul.u32 2, %s19
      %p174 = scmp.lt.s32.totalorder %s18, 1
      %s175 = scalar_select %p174, %s18, 1
      %p176 = scmp.lt.s32.totalorder %s173, 1
      %s177 = scalar_select %p176, %s173, 1
      %s178 = smul.addr %s175, 2
      %s179 = sadd.s32 %s177, %s178
      %s180 = smul.addr %s179, 4
      %s181 = scalar_lea.vmem %s0, %s180
      %p182 = pneg %p49
      %p183 = pneg %p46
      %p184 = scmp.lt.s32.totalorder %s18, 1
      %s185 = scalar_select %p184, %s18, 1
      %s186 = smul.addr %s185, 4
      %s187 = scalar_lea.vmem %s1, %s186
      %p188 = pneg %p75
      %p189 = pneg %p72
      %p190 = pneg %p96
      %p191 = pneg %p93
      %p192 = pneg %p124
      %p193 = pneg %p121
      %s194 = smul.u32 2, %s19
      %p195 = scmp.lt.s32.totalorder %s18, 1
      %s196 = scalar_select %p195, %s18, 1
      %p197 = scmp.lt.s32.totalorder %s194, 1
      %s198 = scalar_select %p197, %s194, 1
      %s199 = smul.addr %s196, 2
      %s200 = sadd.s32 %s198, %s199
      %s201 = smul.addr %s200, 4
      %s202 = scalar_lea.vmem %s3, %s201
      %s203 = smul.u32 2, %s19
      %p204 = scmp.lt.s32.totalorder %s18, 1
      %s205 = scalar_select %p204, %s18, 1
      %p206 = scmp.lt.s32.totalorder %s203, 1
      %s207 = scalar_select %p206, %s203, 1
      %s208 = smul.addr %s205, 2
      %s209 = sadd.s32 %s207, %s208
      %s210 = smul.addr %s209, 4
      %s211 = scalar_lea.vmem %s0, %s210
      %s212 = smul.u32 2, %s19
      %p213 = scmp.lt.s32.totalorder %s18, 1
      %s214 = scalar_select %p213, %s18, 1
      %s215 = smul.addr %s214, 4
      %s216 = scalar_lea.vmem %s1, %s215
      %s217 = smul.u32 2, %s19
      %p218 = scmp.lt.s32.totalorder %s18, 1
      %s219 = scalar_select %p218, %s18, 1
      %p220 = scmp.lt.s32.totalorder %s217, 1
      %s221 = scalar_select %p220, %s217, 1
      %s222 = smul.addr %s219, 2
      %s223 = sadd.s32 %s221, %s222
      %s224 = smul.addr %s223, 4
      %s225 = scalar_lea.vmem %s3, %s224
      %s226 = smul.u32 2, %s19
      %v227 = vld [vmem:[%s216] sm:$0x7]
      %v228 = vld [vmem:[%s211] sm:$0xff]
      %v229 = vld [vmem:[%s2] sm:$0x7]
      %231 = vset.pattern.permute.xlu0 0
      %232 = vperm.xlu0 %231, %v229
      %v233 = vpop.permute.xlu0 %232
      %236 = vst [vmem:[#allocation1] ss:$2 sm:$0xff] %v228
      %v237 = vld.sshfl [vmem:[#allocation1] sm:$0xff pattern:$0x75316420]
      %v238 = vld.sshfl [vmem:[#allocation1 + $0x8] sm:$0xff pattern:$0x75316420]
      %vm239 = vcmask 31744
      %v241 = vsel %vm239, %v227, 0
      %vm243 = vcmask 1043456
      %v244 = vsel %vm243, %v237, 0
      %v246 = vsel %vm243, %v238, 0
      %248 = vmatpush.msra.mxu0 0.0
      %249 = vmatpush.msra.mxu0 0.0
      %250 = vmatpush.msra.mxu0 0.0
      %251 = vmatpush.msra.mxu0 0.0
      %252 = vmatpush.msra.mxu0 0.0
      %253 = vmatpush.msra.mxu0 0.0
      %254 = vmatpush.msra.mxu0 0.0
      %255 = vmatpush.msra.mxu0 0.0
      %256 = vmatpush.msra.mxu0 0.0
      %257 = vmatpush.msra.mxu0 0.0
      %258 = vmatpush.msra.mxu0 0.0
      %259 = vmatpush.msra.mxu0 0.0
      %260 = vmatpush.msra.mxu0 0.0
      %261 = vmatpush.msra.mxu0 0.0
      %262 = vmatpush.msra.mxu0 0.0
      %263 = vmatpush.msra.mxu0 %v244
      %264 = vmatmul.f32.gmra.mxu0 %v241
      %v265 = vpop.f32.mrf.mxu0
      %v266 = vadd.f32 %v233, %v265
      %267 = vdwg.mxu0
      %268 = vmatpush.msra.mxu0 0.0
      %269 = vmatpush.msra.mxu0 0.0
      %270 = vmatpush.msra.mxu0 0.0
      %271 = vmatpush.msra.mxu0 0.0
      %272 = vmatpush.msra.mxu0 0.0
      %273 = vmatpush.msra.mxu0 0.0
      %274 = vmatpush.msra.mxu0 0.0
      %275 = vmatpush.msra.mxu0 0.0
      %276 = vmatpush.msra.mxu0 0.0
      %277 = vmatpush.msra.mxu0 0.0
      %278 = vmatpush.msra.mxu0 0.0
      %279 = vmatpush.msra.mxu0 0.0
      %280 = vmatpush.msra.mxu0 0.0
      %281 = vmatpush.msra.mxu0 0.0
      %282 = vmatpush.msra.mxu0 0.0
      %283 = vmatpush.msra.mxu0 %v246
      %284 = vmatmul.f32.gmra.mxu0 %v241
      %v285 = vpop.f32.mrf.mxu0
      %v286 = vadd.f32 %v233, %v285
      %287 = vdwg.mxu0
      %v290 = vrot.slane %v286, 4
      %v291 = vsel %vm243, %v266, %v290
      %293 = vst [vmem:[%s225] sm:$0x77] %v291
      %s294 = smul.u32 2, %s19
      %p295 = scmp.lt.s32.totalorder %s18, 1
      %s296 = scalar_select %p295, %s18, 1
      %p297 = scmp.lt.s32.totalorder %s294, 1
      %s298 = scalar_select %p297, %s294, 1
      %s299 = smul.addr %s296, 2
      %s300 = sadd.s32 %s298, %s299
      %s301 = smul.addr %s300, 4
      %s302 = scalar_lea.vmem %s3, %s301
      // Predicated region
      $region33: #{tpu_custom_call.1} parent=31 // pred_check
        %p303 = pneg %p121
      $region34: #{tpu_custom_call.1} parent=31 // pred_check_branch
        %305 = sbr.rel (%p303) target = $region36
      $region35: #{tpu_custom_call.1} parent=31 // pred_region
        %s306 = smul.u32 2, %s19
      $region36: #{tpu_custom_call.1} parent=31 // pred_fallthru
        _
    $region32: #{tpu_custom_call.1} parent=5 // pred_fallthru
      _
    %p307 = scmp.le.s32.totalorder 2, %s9
    // Predicated region
    $region37: #{tpu_custom_call.1} parent=5 // pred_check
      %p308 = pneg %p307
    $region38: #{tpu_custom_call.1} parent=5 // pred_check_branch
      %310 = sbr.rel (%p308) target = $region40
    $region39: #{tpu_custom_call.1} parent=5 // pred_region
      %s311 = ssub.s32 %s9, 2
      // Predicated region
      $region41: #{tpu_custom_call.1} parent=39 // pred_check
        %p312 = pneg %p127
      $region42: #{tpu_custom_call.1} parent=39 // pred_check_branch
        %314 = sbr.rel (%p312) target = $region44
      $region43: #{tpu_custom_call.1} parent=39 // pred_region
        %s315 = smul.u32 2, %s21
        %p316 = scmp.lt.s32.totalorder %s20, 1
        %s317 = scalar_select %p316, %s20, 1
        %p318 = scmp.lt.s32.totalorder %s315, 1
        %s319 = scalar_select %p318, %s315, 1
        %s320 = smul.addr %s317, 2
        %s321 = sadd.s32 %s319, %s320
        %s322 = smul.addr %s321, 4
        %s323 = scalar_lea.vmem %s3, %s322
      $region44: #{tpu_custom_call.1} parent=39 // pred_fallthru
        _
    $region40: #{tpu_custom_call.1} parent=5 // pred_fallthru
      _
  $region6: #{tpu_custom_call.1} parent=0 // loop_footer
    %s13 = sadd.s32 1, %s9
  $region7: #{tpu_custom_call.1} parent=0 // loop_footer_branch
    %8 = sbr.rel target = $region3
  $region8: #{tpu_custom_call.1} parent=0 // loop_exit
    _

</llo_original>
